<compile_context>
chip_gen: v5e
topology: v5e:2x2
jax: 0.10.0
libtpu: 0.0.40
codegen_flags: <defaults>
</compile_context>

<pallas_src>
import functools
import math

import jax
import jax.numpy as jnp
from jax.experimental import pallas as pl
from jax.experimental.pallas import tpu as pltpu

_INV_SQRT2 = 1.0 / math.sqrt(2.0)


def _round_up(x, m):
    return ((x + m - 1) // m) * m


def _pad2d(a, rows, cols):
    pr, pc = rows - a.shape[0], cols - a.shape[1]
    if pr or pc:
        a = jnp.pad(a, ((0, pr), (0, pc)))
    return a


def _gelu_exact(h):
    # Exact erf-based GELU (matches torch.nn.GELU default); erf lowers to the EUP slot.
    return 0.5 * h * (1.0 + jax.lax.erf(h * _INV_SQRT2))


def _ffn_fused_kernel(x_ref, w1_ref, b1_ref, w2_ref, b2_ref, o_ref):
    # PATH A: full weight matrices are VMEM-resident; one row tile per grid step.
    x = x_ref[...].astype(w1_ref.dtype)
    h = jnp.dot(x, w1_ref[...], preferred_element_type=jnp.float32) + b1_ref[...]
    h = _gelu_exact(h)
    # Dropout(p=0.0) is identity at these settings.
    # TODO(synk): training-mode dropout with p>0 would need pltpu.prng_seed/prng_random_bits masking.
    y = jnp.dot(h.astype(w2_ref.dtype), w2_ref[...], preferred_element_type=jnp.float32)
    o_ref[...] = (y + b2_ref[...]).astype(o_ref.dtype)


def _ffn_stream_kernel(x_ref, w1_ref, b1_ref, w2_ref, b2_ref, o_ref, acc_ref):
    # PATH B: hidden axis streamed in slabs (trailing "arbitrary" axis); f32 accumulator.
    k = pl.program_id(1)
    x = x_ref[...].astype(w1_ref.dtype)
    h = jnp.dot(x, w1_ref[...], preferred_element_type=jnp.float32) + b1_ref[...]
    h = _gelu_exact(h)
    part = jnp.dot(h.astype(w2_ref.dtype), w2_ref[...], preferred_element_type=jnp.float32)

    @pl.when(k == 0)
    def _():
        acc_ref[...] = part          # first slab: write (skips a zero-fill + read pass)

    @pl.when(k > 0)
    def _():
        acc_ref[...] += part

    @pl.when(k == pl.num_programs(1) - 1)
    def _():
        o_ref[...] = (acc_ref[...] + b2_ref[...]).astype(o_ref.dtype)


@functools.partial(jax.jit, static_argnames=("compute_dtype", "force_stream"))
def feed_forward(x, w1, b1, w2, b2, *, compute_dtype=jnp.bfloat16, force_stream=False):
    """x: (..., dim). w1: (dim, hidden), b1: (hidden,), w2: (hidden, dim), b2: (dim,)."""
    orig_shape = x.shape
    dim = orig_shape[-1]
    hidden = w1.shape[1]
    M = 1
    for s in orig_shape[:-1]:
        M *= s
    out_dtype = x.dtype

    xb = jnp.dtype(x.dtype).itemsize
    cb = jnp.dtype(compute_dtype).itemsize
    ob = jnp.dtype(out_dtype).itemsize

    dim_pad = _round_up(dim, 128)
    hidden128 = _round_up(hidden, 128)
    M8 = _round_up(max(M, 1), 8)

    VMEM_BUDGET = 40 * 1024 * 1024   # conservative: leaves headroom on v7x's 64 MiB/TC

    def need_fused(tm_):
        return (2 * tm_ * dim_pad * xb              # x tile (double-buffered)
                + 2 * dim_pad * hidden128 * cb      # W1 (worst-case 2 buffers)
                + 2 * hidden128 * dim_pad * cb      # W2
                + 2 * 8 * hidden128 * 4 + 2 * 8 * dim_pad * 4   # biases (sublane-padded)
                + 2 * tm_ * dim_pad * ob            # out tile
                + tm_ * hidden128 * (4 + cb))       # GELU intermediate (f32 + cast copy)

    def need_stream(tm_, th_):
        return (2 * tm_ * dim_pad * xb
                + 2 * dim_pad * th_ * cb
                + 2 * th_ * dim_pad * cb
                + 2 * 8 * th_ * 4 + 2 * 8 * dim_pad * 4
                + 2 * tm_ * dim_pad * ob
                + tm_ * dim_pad * 4                 # f32 accumulator scratch
                + tm_ * th_ * (4 + cb))             # GELU intermediate

    tm_cands = sorted({min(c, M8) for c in (512, 256, 128, 64, 32, 16, 8)}, reverse=True)

    tm_fused = None
    if not force_stream:
        for c in tm_cands:
            if need_fused(c) <= VMEM_BUDGET:
                tm_fused = c
                break

    x2d = x.reshape(M, dim)

    if tm_fused is not None:
        # ------------- PATH A: weights fully VMEM-resident -------------
        tm = tm_fused
        hidden_pad = hidden128
        M_pad = _round_up(M, tm)
        x_p = _pad2d(x2d, M_pad, dim_pad)                           # keep original dtype
        w1_p = _pad2d(w1, dim_pad, hidden_pad).astype(compute_dtype)
        w2_p = _pad2d(w2, hidden_pad, dim_pad).astype(compute_dtype)
        b1_p = _pad2d(b1.reshape(1, hidden), 1, hidden_pad).astype(jnp.float32)
        b2_p = _pad2d(b2.reshape(1, dim), 1, dim_pad).astype(jnp.float32)

        vmem_limit = int(min(max(need_fused(tm) * 5 // 4, 16 * 1024 * 1024),
                             64 * 1024 * 1024))
        cost = pl.CostEstimate(
            flops=4 * M * dim * hidden,
            transcendentals=M * hidden,
            bytes_accessed=int(x.size * xb + (w1.size + w2.size) * cb
                               + (b1.size + b2.size) * 4 + M * dim * ob))

        out2d = pl.pallas_call(
            _ffn_fused_kernel,
            out_shape=jax.ShapeDtypeStruct((M_pad, dim_pad), out_dtype),
            grid_spec=pltpu.PrefetchScalarGridSpec(
                num_scalar_prefetch=0,
                grid=(M_pad // tm,),
                in_specs=[
                    pl.BlockSpec((tm, dim_pad), lambda i: (i, 0)),          # x row tile
                    pl.BlockSpec((dim_pad, hidden_pad), lambda i: (0, 0)),  # W1 (resident)
                    pl.BlockSpec((1, hidden_pad), lambda i: (0, 0)),        # b1
                    pl.BlockSpec((hidden_pad, dim_pad), lambda i: (0, 0)),  # W2 (resident)
                    pl.BlockSpec((1, dim_pad), lambda i: (0, 0)),           # b2
                ],
                out_specs=pl.BlockSpec((tm, dim_pad), lambda i: (i, 0)),
            ),
            compiler_params=pltpu.CompilerParams(
                dimension_semantics=("parallel",),
                vmem_limit_bytes=vmem_limit,
            ),
            cost_estimate=cost,
        )(x_p, w1_p, b1_p, w2_p, b2_p)
    else:
        # ------------- PATH B: hidden axis streamed in slabs -------------
        th = min(512, hidden128)
        tm = None
        for c in tm_cands:
            if need_stream(c, th) <= VMEM_BUDGET:
                tm = c
                break
        if tm is None:
            tm = 8
        hidden_pad = _round_up(hidden, th)
        M_pad = _round_up(M, tm)
        x_p = _pad2d(x2d, M_pad, dim_pad)
        w1_p = _pad2d(w1, dim_pad, hidden_pad).astype(compute_dtype)
        w2_p = _pad2d(w2, hidden_pad, dim_pad).astype(compute_dtype)
        b1_p = _pad2d(b1.reshape(1, hidden), 1, hidden_pad).astype(jnp.float32)
        b2_p = _pad2d(b2.reshape(1, dim), 1, dim_pad).astype(jnp.float32)

        grid = (M_pad // tm, hidden_pad // th)
        vmem_limit = int(min(max(need_stream(tm, th) * 5 // 4, 16 * 1024 * 1024),
                             64 * 1024 * 1024))
        cost = pl.CostEstimate(
            flops=4 * M * dim * hidden,
            transcendentals=M * hidden,
            bytes_accessed=int(x.size * xb + grid[0] * (w1.size + w2.size) * cb
                               + (b1.size + b2.size) * 4 + M * dim * ob))

        out2d = pl.pallas_call(
            _ffn_stream_kernel,
            out_shape=jax.ShapeDtypeStruct((M_pad, dim_pad), out_dtype),
            grid_spec=pltpu.PrefetchScalarGridSpec(
                num_scalar_prefetch=0,
                grid=grid,
                in_specs=[
                    pl.BlockSpec((tm, dim_pad), lambda i, k: (i, 0)),   # x tile (resident over k)
                    pl.BlockSpec((dim_pad, th), lambda i, k: (0, k)),   # W1 hidden-column slab
                    pl.BlockSpec((1, th), lambda i, k: (0, k)),         # b1 slab
                    pl.BlockSpec((th, dim_pad), lambda i, k: (k, 0)),   # W2 hidden-row slab
                    pl.BlockSpec((1, dim_pad), lambda i, k: (0, 0)),    # b2 (full)
                ],
                out_specs=pl.BlockSpec((tm, dim_pad), lambda i, k: (i, 0)),
                scratch_shapes=[pltpu.VMEM((tm, dim_pad), jnp.float32)],
            ),
            compiler_params=pltpu.CompilerParams(
                dimension_semantics=("parallel", "arbitrary"),
                vmem_limit_bytes=vmem_limit,
            ),
            cost_estimate=cost,
        )(x_p, w1_p, b1_p, w2_p, b2_p)

    return out2d[:M, :dim].reshape(orig_shape)


def _reference(x, w1, b1, w2, b2):
    h = x @ w1 + b1
    h = 0.5 * h * (1.0 + jax.lax.erf(h / jnp.sqrt(2.0).astype(h.dtype)))
    return h @ w2 + b2


if __name__ == "__main__":
    # Shapes implied by the module: tokens of size `dim`, hidden_dim for the MLP.
    B, N, dim, hidden = 2, 8, 32, 64

    key = jax.random.PRNGKey(0)
    kx, kw1, kb1, kw2, kb2 = jax.random.split(key, 5)

    x = jax.random.normal(kx, (B, N, dim), dtype=jnp.float32)

    # Deterministic parameter init (mimicking nn.Linear's uniform fan-in init).
    # nn.Linear stores weight as (out, in); we keep (in, out) since y = x @ W^T + b.
    lim1 = 1.0 / math.sqrt(dim)
    w1 = jax.random.uniform(kw1, (dim, hidden), jnp.float32, -lim1, lim1)
    b1 = jax.random.uniform(kb1, (hidden,), jnp.float32, -lim1, lim1)
    lim2 = 1.0 / math.sqrt(hidden)
    w2 = jax.random.uniform(kw2, (hidden, dim), jnp.float32, -lim2, lim2)
    b2 = jax.random.uniform(kb2, (dim,), jnp.float32, -lim2, lim2)

    ref = _reference(x, w1, b1, w2, b2)

    # f32 compute path (weights-resident kernel): tight check of kernel math.
    out_f32 = jax.block_until_ready(
        feed_forward(x, w1, b1, w2, b2, compute_dtype=jnp.float32))
    assert out_f32.shape == (B, N, dim)
    assert jnp.allclose(out_f32, ref, atol=1e-5, rtol=1e-5), "f32 fused mismatch vs. reference"

    # bf16-weights path (production default): looser tolerance from bf16 rounding.
    out_bf16 = jax.block_until_ready(feed_forward(x, w1, b1, w2, b2))
    assert out_bf16.shape == (B, N, dim)
    assert jnp.allclose(out_bf16, ref, atol=3e-2, rtol=3e-2), "bf16 fused mismatch vs. reference"

    # Streaming fallback path (exercised explicitly so the large-weight path stays verified).
    out_stream = jax.block_until_ready(
        feed_forward(x, w1, b1, w2, b2, compute_dtype=jnp.float32, force_stream=True))
    assert jnp.allclose(out_stream, ref, atol=1e-5, rtol=1e-5), "stream mismatch vs. reference"

    print("KERNEL_OK")
</pallas_src>

<mosaic_0001>
module attributes {stable_mosaic.version = 11 : i64} {
  func.func @_ffn_fused_kernel(%arg0: i32, %arg1: memref<16x128xf32, #tpu.memory_space<vmem>>, %arg2: memref<128x128xf32, #tpu.memory_space<vmem>>, %arg3: memref<1x128xf32, #tpu.memory_space<vmem>>, %arg4: memref<128x128xf32, #tpu.memory_space<vmem>>, %arg5: memref<1x128xf32, #tpu.memory_space<vmem>>, %arg6: memref<16x128xf32, #tpu.memory_space<vmem>>) attributes {dimension_semantics = [#tpu.dimension_semantics<parallel>], iteration_bounds = array<i64: 1>, scalar_prefetch = 0 : i64, scratch_operands = 0 : i64, tpu.core_type = #tpu.core_type<tc>, window_params = [{transform_indices = @transform_0, window_bounds = array<i64: 16, 128>}, {pipeline_mode = #tpu.pipeline_mode<synchronous>, transform_indices = @transform_1, window_bounds = array<i64: 128, 128>}, {pipeline_mode = #tpu.pipeline_mode<synchronous>, transform_indices = @transform_2, window_bounds = array<i64: 1, 128>}, {pipeline_mode = #tpu.pipeline_mode<synchronous>, transform_indices = @transform_3, window_bounds = array<i64: 128, 128>}, {pipeline_mode = #tpu.pipeline_mode<synchronous>, transform_indices = @transform_4, window_bounds = array<i64: 1, 128>}, {transform_indices = @transform_5, window_bounds = array<i64: 16, 128>}]} {
    %c0 = arith.constant 0 : index
    %c0_0 = arith.constant 0 : index
    %0 = vector.load %arg1[%c0, %c0_0] : memref<16x128xf32, #tpu.memory_space<vmem>>, vector<16x128xf32>
    %c0_1 = arith.constant 0 : index
    %c0_2 = arith.constant 0 : index
    %1 = vector.load %arg2[%c0_1, %c0_2] : memref<128x128xf32, #tpu.memory_space<vmem>>, vector<128x128xf32>
    %cst = arith.constant dense<0.000000e+00> : vector<16x128xf32>
    %2 = tpu.matmul %0, %1, %cst {dimension_numbers = #tpu.dot_dimension_numbers<[1], [0], [0], [1], [0, 0, 1, 1], [], []>} : vector<16x128xf32>, vector<128x128xf32>, vector<16x128xf32> -> vector<16x128xf32>
    %c0_3 = arith.constant 0 : index
    %c0_4 = arith.constant 0 : index
    %3 = vector.load %arg3[%c0_3, %c0_4] : memref<1x128xf32, #tpu.memory_space<vmem>>, vector<1x128xf32>
    %4 = vector.broadcast %3 : vector<1x128xf32> to vector<16x128xf32>
    %5 = arith.addf %2, %4 : vector<16x128xf32>
    %cst_5 = arith.constant 5.000000e-01 : f32
    %6 = vector.broadcast %cst_5 : f32 to vector<16x128xf32>
    %7 = arith.mulf %6, %5 : vector<16x128xf32>
    %cst_6 = arith.constant 0.707106769 : f32
    %8 = vector.broadcast %cst_6 : f32 to vector<16x128xf32>
    %9 = arith.mulf %5, %8 : vector<16x128xf32>
    %10 = math.erf %9 : vector<16x128xf32>
    %cst_7 = arith.constant 1.000000e+00 : f32
    %11 = vector.broadcast %cst_7 : f32 to vector<16x128xf32>
    %12 = arith.addf %11, %10 : vector<16x128xf32>
    %13 = arith.mulf %7, %12 : vector<16x128xf32>
    %c0_8 = arith.constant 0 : index
    %c0_9 = arith.constant 0 : index
    %14 = vector.load %arg4[%c0_8, %c0_9] : memref<128x128xf32, #tpu.memory_space<vmem>>, vector<128x128xf32>
    %cst_10 = arith.constant dense<0.000000e+00> : vector<16x128xf32>
    %15 = tpu.matmul %13, %14, %cst_10 {dimension_numbers = #tpu.dot_dimension_numbers<[1], [0], [0], [1], [0, 0, 1, 1], [], []>} : vector<16x128xf32>, vector<128x128xf32>, vector<16x128xf32> -> vector<16x128xf32>
    %c0_11 = arith.constant 0 : index
    %c0_12 = arith.constant 0 : index
    %16 = vector.load %arg5[%c0_11, %c0_12] : memref<1x128xf32, #tpu.memory_space<vmem>>, vector<1x128xf32>
    %17 = vector.broadcast %16 : vector<1x128xf32> to vector<16x128xf32>
    %18 = arith.addf %15, %17 : vector<16x128xf32>
    %c0_13 = arith.constant 0 : index
    %c0_14 = arith.constant 0 : index
    %19 = vector.load %arg6[%c0_13, %c0_14] : memref<16x128xf32, #tpu.memory_space<vmem>>, vector<16x128xf32>
    tpu.vector_store %arg6[%c0_13, %c0_14], %18 {strides = array<i32>} : memref<16x128xf32, #tpu.memory_space<vmem>>, vector<16x128xf32>,
    return
  }
  func.func @transform_0(%arg0: i32) -> (i32, i32) {
    %c0_i32 = arith.constant 0 : i32
    %c0_i32_0 = arith.constant 0 : i32
    return %arg0, %c0_i32 : i32, i32
  }
  func.func @transform_1(%arg0: i32) -> (i32, i32) {
    %c0_i32 = arith.constant 0 : i32
    %c0_i32_0 = arith.constant 0 : i32
    %c0_i32_1 = arith.constant 0 : i32
    return %c0_i32, %c0_i32_0 : i32, i32
  }
  func.func @transform_2(%arg0: i32) -> (i32, i32) {
    %c0_i32 = arith.constant 0 : i32
    %c0_i32_0 = arith.constant 0 : i32
    %c0_i32_1 = arith.constant 0 : i32
    return %c0_i32, %c0_i32_0 : i32, i32
  }
  func.func @transform_3(%arg0: i32) -> (i32, i32) {
    %c0_i32 = arith.constant 0 : i32
    %c0_i32_0 = arith.constant 0 : i32
    %c0_i32_1 = arith.constant 0 : i32
    return %c0_i32, %c0_i32_0 : i32, i32
  }
  func.func @transform_4(%arg0: i32) -> (i32, i32) {
    %c0_i32 = arith.constant 0 : i32
    %c0_i32_0 = arith.constant 0 : i32
    %c0_i32_1 = arith.constant 0 : i32
    return %c0_i32, %c0_i32_0 : i32, i32
  }
  func.func @transform_5(%arg0: i32) -> (i32, i32) {
    %c0_i32 = arith.constant 0 : i32
    %c0_i32_0 = arith.constant 0 : i32
    return %arg0, %c0_i32 : i32, i32
  }
}

</mosaic_0001>

<llo_original>
// kernel: feed_forward.1
$region0: #{feed_forward.1}
  #allocation0 [shape = 'u32[]', space=smem, size = 0x4, offset = 0x4, fixed_abs, tag = 'smem constant byte address 0x4 - core index']
  #allocation1 [shape = 'u32[72,128]{1,0:T(1,128)}', space=vmem, size = 0x9000, scoped, tag = 'internal scratch']
  %s0 = inlined_call_operand.vmem [shape: f32[16,128], index: 0, kind: input, shape index: {}]
  %s1 = inlined_call_operand.vmem [shape: f32[128,128], index: 1, kind: input, shape index: {}]
  %s2 = inlined_call_operand.vmem [shape: f32[1,128], index: 2, kind: input, shape index: {}]
  %s3 = inlined_call_operand.vmem [shape: f32[128,128], index: 3, kind: input, shape index: {}]
  %s4 = inlined_call_operand.vmem [shape: f32[1,128], index: 4, kind: input, shape index: {}]
  %s5 = inlined_call_operand.vmem [shape: f32[16,128], index: 5, kind: output, shape index: {}]
  %s6 = sld [smem:[#allocation0]]
  $region30: #{feed_forward.1} parent=0
    _
  %s8 = ssub.s32 1, %s6
  %s9 = scalar_select 0, %s8, %s6
  // Predicated region
  $region2: #{feed_forward.1} parent=0 // pred_check
    _
  $region3: #{feed_forward.1} parent=0 // pred_check_branch
    %11 = sbr.rel (0) target = $region5
  $region4: #{feed_forward.1} parent=0 // pred_region
    _
  $region5: #{feed_forward.1} parent=0 // pred_fallthru
    _
  // Predicated region
  $region6: #{feed_forward.1} parent=0 // pred_check
    _
  $region7: #{feed_forward.1} parent=0 // pred_check_branch
    %13 = sbr.rel (0) target = $region9
  $region8: #{feed_forward.1} parent=0 // pred_region
    _
  $region9: #{feed_forward.1} parent=0 // pred_fallthru
    _
  // Predicated region
  $region10: #{feed_forward.1} parent=0 // pred_check
    _
  $region11: #{feed_forward.1} parent=0 // pred_check_branch
    %15 = sbr.rel (0) target = $region13
  $region12: #{feed_forward.1} parent=0 // pred_region
    _
  $region13: #{feed_forward.1} parent=0 // pred_fallthru
    _
  // Predicated region
  $region14: #{feed_forward.1} parent=0 // pred_check
    _
  $region15: #{feed_forward.1} parent=0 // pred_check_branch
    %17 = sbr.rel (0) target = $region17
  $region16: #{feed_forward.1} parent=0 // pred_region
    _
  $region17: #{feed_forward.1} parent=0 // pred_fallthru
    _
  // Predicated region
  $region18: #{feed_forward.1} parent=0 // pred_check
    _
  $region19: #{feed_forward.1} parent=0 // pred_check_branch
    %19 = sbr.rel (0) target = $region21
  $region20: #{feed_forward.1} parent=0 // pred_region
    _
  $region21: #{feed_forward.1} parent=0 // pred_fallthru
    _
  %v20 = vld [vmem:[%s0] sm:$0xff]
  %v21 = vld [vmem:[%s0 + $0x8] sm:$0xff]
  %v22 = vld [vmem:[%s1] sm:$0xff]
  %v23 = vld [vmem:[%s1 + $0x8] sm:$0xff]
  %v24 = vld [vmem:[%s1 + $0x10] sm:$0xff]
  %v25 = vld [vmem:[%s1 + $0x18] sm:$0xff]
  %v26 = vld [vmem:[%s1 + $0x20] sm:$0xff]
  %v27 = vld [vmem:[%s1 + $0x28] sm:$0xff]
  %v28 = vld [vmem:[%s1 + $0x30] sm:$0xff]
  %v29 = vld [vmem:[%s1 + $0x38] sm:$0xff]
  %v30 = vld [vmem:[%s1 + $0x40] sm:$0xff]
  %v31 = vld [vmem:[%s1 + $0x48] sm:$0xff]
  %v32 = vld [vmem:[%s1 + $0x50] sm:$0xff]
  %v33 = vld [vmem:[%s1 + $0x58] sm:$0xff]
  %v34 = vld [vmem:[%s1 + $0x60] sm:$0xff]
  %v35 = vld [vmem:[%s1 + $0x68] sm:$0xff]
  %v36 = vld [vmem:[%s1 + $0x70] sm:$0xff]
  %v37 = vld [vmem:[%s1 + $0x78] sm:$0xff]
  %v38 = vld [vmem:[%s2] sm:$0x1]
  %v40 = vperm.slane %v38, 0
  %42 = vmatpush.msra.mxu0 %v37
  %43 = vmatpush.msra.mxu0 %v36
  %44 = vmatpush.msra.mxu0 %v35
  %45 = vmatpush.msra.mxu0 %v34
  %46 = vmatpush.msra.mxu0 %v33
  %47 = vmatpush.msra.mxu0 %v32
  %48 = vmatpush.msra.mxu0 %v31
  %49 = vmatpush.msra.mxu0 %v30
  %50 = vmatpush.msra.mxu0 %v29
  %51 = vmatpush.msra.mxu0 %v28
  %52 = vmatpush.msra.mxu0 %v27
  %53 = vmatpush.msra.mxu0 %v26
  %54 = vmatpush.msra.mxu0 %v25
  %55 = vmatpush.msra.mxu0 %v24
  %56 = vmatpush.msra.mxu0 %v23
  %57 = vmatpush.msra.mxu0 %v22
  %58 = vmatmul.f32.gmra.mxu0 %v20
  %v59 = vpop.f32.mrf.mxu0
  %v60 = vadd.f32 %v40, %v59
  %61 = vmatmul.f32.gmra.mxu0 %v21
  %v62 = vpop.f32.mrf.mxu0
  %v63 = vadd.f32 %v40, %v62
  %64 = vdwg.mxu0
  %v65 = vmul.f32 %v60, 0.5
  %v66 = vmul.f32 %v63, 0.5
  %v67 = vmul.f32 %v60, 0.70710677
  %v68 = vmul.f32 %v63, 0.70710677
  %v69 = vmul.f32 %v67, %v67
  %v70 = vmin.f32 16.0, %v69
  %v71 = vmul.f32 %v70, 2.1237322e-06
  %v72 = vadd.f32 %v71, 0.00028619796
  %v73 = vmul.f32 %v70, %v72
  %v74 = vadd.f32 %v73, 0.0036580483
  %v75 = vmul.f32 %v70, %v74
  %v76 = vadd.f32 %v75, 0.05243302
  %v77 = vmul.f32 %v70, %v76
  %v78 = vadd.f32 %v77, 0.18741608
  %v79 = vmul.f32 %v70, %v78
  %v80 = vadd.f32 %v79, 1.1283791
  %v81 = vmul.f32 %v67, %v80
  %v82 = vmul.f32 %v70, 3.8918573e-05
  %v83 = vadd.f32 %v82, 0.001143296
  %v84 = vmul.f32 %v70, %v83
  %v85 = vadd.f32 %v84, 0.014752088
  %v86 = vmul.f32 %v70, %v85
  %v87 = vadd.f32 %v86, 0.112945676
  %v88 = vmul.f32 %v70, %v87
  %v89 = vadd.f32 %v88, 0.4994258
  %v90 = vmul.f32 %v70, %v89
  %v91 = vadd.f32 %v90, 1.0
  %v92 = vrcp.pop %v91
  %v93 = vmul.f32 %v91, %v92
  %v94 = vsub.f32 1.0, %v93
  %v95 = vmul.f32 %v92, %v94
  %v96 = vadd.f32 %v92, %v95
  %vm97 = vweird.f32 %v91
  %vm98 = vweird.f32 %v92
  %vm99 = vmor %vm97, %vm98
  %v100 = vsel %vm99, %v92, %v96
  %v101 = vand.u32 2147483647, %v91
  %vm102 = vcmp.eq.f32.partialorder %v101, 8.507059e+37
  %v103 = vand.u32 %v91, 2147483648
  %v104 = vor.u32 1.1754944e-38, %v103
  %v105 = vsel %vm102, %v104, %v100
  %v106 = vmul.f32 %v81, %v105
  %v107 = vmin.f32 %v106, 1.0
  %v108 = vmax.f32 %v107, -1.0
  %v109 = vmul.f32 %v68, %v68
  %v110 = vmin.f32 16.0, %v109
  %v111 = vmul.f32 %v110, 2.1237322e-06
  %v112 = vadd.f32 %v111, 0.00028619796
  %v113 = vmul.f32 %v110, %v112
  %v114 = vadd.f32 %v113, 0.0036580483
  %v115 = vmul.f32 %v110, %v114
  %v116 = vadd.f32 %v115, 0.05243302
  %v117 = vmul.f32 %v110, %v116
  %v118 = vadd.f32 %v117, 0.18741608
  %v119 = vmul.f32 %v110, %v118
  %v120 = vadd.f32 %v119, 1.1283791
  %v121 = vmul.f32 %v68, %v120
  %v122 = vmul.f32 %v110, 3.8918573e-05
  %v123 = vadd.f32 %v122, 0.001143296
  %v124 = vmul.f32 %v110, %v123
  %v125 = vadd.f32 %v124, 0.014752088
  %v126 = vmul.f32 %v110, %v125
  %v127 = vadd.f32 %v126, 0.112945676
  %v128 = vmul.f32 %v110, %v127
  %v129 = vadd.f32 %v128, 0.4994258
  %v130 = vmul.f32 %v110, %v129
  %v131 = vadd.f32 %v130, 1.0
  %v132 = vrcp.pop %v131
  %v133 = vmul.f32 %v131, %v132
  %v134 = vsub.f32 1.0, %v133
  %v135 = vmul.f32 %v132, %v134
  %v136 = vadd.f32 %v132, %v135
  %vm137 = vweird.f32 %v131
  %vm138 = vweird.f32 %v132
  %vm139 = vmor %vm137, %vm138
  %v140 = vsel %vm139, %v132, %v136
  %v141 = vand.u32 2147483647, %v131
  %vm142 = vcmp.eq.f32.partialorder %v141, 8.507059e+37
  %v143 = vand.u32 %v131, 2147483648
  %v144 = vor.u32 1.1754944e-38, %v143
  %v145 = vsel %vm142, %v144, %v140
  %v146 = vmul.f32 %v121, %v145
  %v147 = vmin.f32 %v146, 1.0
  %v148 = vmax.f32 %v147, -1.0
  %v149 = vadd.f32 %v108, 1.0
  %v150 = vadd.f32 %v148, 1.0
  %v151 = vmul.f32 %v65, %v149
  %v152 = vmul.f32 %v66, %v150
  %v153 = vld [vmem:[%s3] sm:$0xff]
  %v154 = vld [vmem:[%s3 + $0x8] sm:$0xff]
  %v155 = vld [vmem:[%s3 + $0x10] sm:$0xff]
  %v156 = vld [vmem:[%s3 + $0x18] sm:$0xff]
  %v157 = vld [vmem:[%s3 + $0x20] sm:$0xff]
  %v158 = vld [vmem:[%s3 + $0x28] sm:$0xff]
  %v159 = vld [vmem:[%s3 + $0x30] sm:$0xff]
  %v160 = vld [vmem:[%s3 + $0x38] sm:$0xff]
  %v161 = vld [vmem:[%s3 + $0x40] sm:$0xff]
  %v162 = vld [vmem:[%s3 + $0x48] sm:$0xff]
  %v163 = vld [vmem:[%s3 + $0x50] sm:$0xff]
  %v164 = vld [vmem:[%s3 + $0x58] sm:$0xff]
  %v165 = vld [vmem:[%s3 + $0x60] sm:$0xff]
  %v166 = vld [vmem:[%s3 + $0x68] sm:$0xff]
  %v167 = vld [vmem:[%s3 + $0x70] sm:$0xff]
  %v168 = vld [vmem:[%s3 + $0x78] sm:$0xff]
  %v169 = vld [vmem:[%s4] sm:$0x1]
  %v171 = vperm.slane %v169, 0
  %173 = vmatpush.msra.mxu0 %v168
  %174 = vmatpush.msra.mxu0 %v167
  %175 = vmatpush.msra.mxu0 %v166
  %176 = vmatpush.msra.mxu0 %v165
  %177 = vmatpush.msra.mxu0 %v164
  %178 = vmatpush.msra.mxu0 %v163
  %179 = vmatpush.msra.mxu0 %v162
  %180 = vmatpush.msra.mxu0 %v161
  %181 = vmatpush.msra.mxu0 %v160
  %182 = vmatpush.msra.mxu0 %v159
  %183 = vmatpush.msra.mxu0 %v158
  %184 = vmatpush.msra.mxu0 %v157
  %185 = vmatpush.msra.mxu0 %v156
  %186 = vmatpush.msra.mxu0 %v155
  %187 = vmatpush.msra.mxu0 %v154
  %188 = vmatpush.msra.mxu0 %v153
  %189 = vmatmul.f32.gmra.mxu0 %v151
  %v190 = vpop.f32.mrf.mxu0
  %v191 = vadd.f32 %v171, %v190
  %192 = vmatmul.f32.gmra.mxu0 %v152
  %v193 = vpop.f32.mrf.mxu0
  %v194 = vadd.f32 %v171, %v193
  %195 = vdwg.mxu0
  %196 = vst [vmem:[%s5] sm:$0xff] %v191
  %197 = vst [vmem:[%s5 + $0x8] sm:$0xff] %v194
  // Predicated region
  $region22: #{feed_forward.1} parent=0 // pred_check
    _
  $region23: #{feed_forward.1} parent=0 // pred_check_branch
    %199 = sbr.rel (0) target = $region25
  $region24: #{feed_forward.1} parent=0 // pred_region
    _
  $region25: #{feed_forward.1} parent=0 // pred_fallthru
    _
  // Predicated region
  $region26: #{feed_forward.1} parent=0 // pred_check
    _
  $region27: #{feed_forward.1} parent=0 // pred_check_branch
    %201 = sbr.rel (0) target = $region29
  $region28: #{feed_forward.1} parent=0 // pred_region
    _
  $region29: #{feed_forward.1} parent=0 // pred_fallthru
    _

</llo_original>
